<compile_context>
chip_gen: v7x
topology: tpu7x:2x2x1
jax: 0.10.0
libtpu: 0.0.40
codegen_flags: <defaults>
</compile_context>

<pallas_src>
import functools

import jax
import jax.numpy as jnp
import numpy as np
from jax import lax
from jax.experimental import pallas as pl
from jax.experimental.pallas import tpu as pltpu

EPS = 1e-5


def _round_up(x, n):
    return (x + n - 1) // n * n


def _down_kernel(x4_ref, hwid_ref, colid_ref,
                 w1_ref, g1_ref, bt1_ref,
                 w2_ref, g2_ref, bt2_ref,
                 o_ref, *, n_batch, hp, wp):
    """Fused MaxPool2d(2) -> (Conv3x3 -> BN -> ReLU) x2.

    Layouts (M = N*Hp*Wp is the lane axis, channels live on sublanes):
      x4    : (4, Cin_p, M) f32  -- the four taps of every 2x2 pool window
      hwid  : (1, M) int32       -- position within image (h*Wp + w)
      colid : (1, M) int32       -- column (w) within image row
      w1    : (Cmid_p, 9*Cin_p) bf16; w2 : (Cout_p, 9*Cmid_p) bf16 (tap-major K)
      g*/bt*: (C_p, 1) f32       -- BN gamma / beta (padding: gamma=1, beta=0)
      o     : (N, Cout_p, Hp*Wp) f32  == padded NCHW with HW flattened
    Conv bias is omitted: it is exactly cancelled by the batch-stat BN mean
    subtraction that follows each conv.
    """
    hw = hp * wp
    m = n_batch * hw

    # ---------------- MaxPool2d(2): max of the four pre-sliced taps ---------
    pooled = jnp.maximum(jnp.maximum(x4_ref[0], x4_ref[1]),
                         jnp.maximum(x4_ref[2], x4_ref[3]))        # (Cin_p, M)

    # ---------------- shared 3x3 shift / halo-mask table --------------------
    hw_id = hwid_ref[...]     # (1, M)
    col_id = colid_ref[...]   # (1, M)
    tap_list = []
    for dy in (-1, 0, 1):
        for dx in (-1, 0, 1):
            shift = dy * wp + dx
            valid = ((hw_id + dy * wp >= 0) & (hw_id + dy * wp < hw) &
                     (col_id + dx >= 0) & (col_id + dx < wp))
            tap_list.append((shift, valid))

    def im2col(v):
        # (C_p, M) f32 -> (9*C_p, M) bf16 slab (tap-major rows).  Lane rolls +
        # halo masks replace any zero-pad scratch store/reload; since C_p is a
        # multiple of 8, every piece is sublane-tile aligned, so the concat is
        # a plain vreg stack (no relayout).
        pieces = []
        for shift, valid in tap_list:
            shifted = v if shift == 0 else pltpu.roll(v, shift=(-shift) % m, axis=1)
            pieces.append(jnp.where(valid, shifted, 0.0))
        return jnp.concatenate(pieces, axis=0).astype(jnp.bfloat16)

    def bn_relu(acc, g_ref, bt_ref):
        # Batch-stat BatchNorm (biased variance, eps=1e-5) folded to one FMA.
        mu = jnp.mean(acc, axis=1, keepdims=True)
        var = jnp.mean((acc - mu) ** 2, axis=1, keepdims=True)
        scale = g_ref[...] * lax.rsqrt(var + EPS)
        shift = bt_ref[...] - mu * scale
        return jnp.maximum(acc * scale + shift, 0.0)

    # Conv1: single fused im2col matmul, K = 9*Cin_p, f32 accumulate on MXU.
    h = bn_relu(jnp.dot(w1_ref[...], im2col(pooled),
                        preferred_element_type=jnp.float32), g1_ref, bt1_ref)
    # Conv2: single fused im2col matmul, K = 9*Cmid_p.
    y = bn_relu(jnp.dot(w2_ref[...], im2col(h),
                        preferred_element_type=jnp.float32), g2_ref, bt2_ref)

    # Store as flattened NCHW (N, Cout_p, Hp*Wp) with static lane slices.
    for n in range(n_batch):
        o_ref[n] = y[:, n * hw:(n + 1) * hw]


def down_forward(x_nchw, params):
    """x_nchw: (N, Cin, H, W) float32. Returns (N, Cout, H//2, W//2) float32."""
    w1_t, b1, g1, bt1, w2_t, b2, g2, bt2 = params
    del b1, b2  # conv bias is a mathematical no-op before batch-stat BatchNorm
    n, cin, h_in, w_in = x_nchw.shape
    cmid, cout = w1_t.shape[0], w2_t.shape[0]
    hp, wp = h_in // 2, w_in // 2
    hw = hp * wp
    m = n * hw

    # Pad channel counts to sublane multiples (8) so all in-kernel im2col tap
    # blocks are tile-aligned.  Zero padding is inert (zero weights / inputs).
    cin_p, cmid_p, cout_p = _round_up(cin, 8), _round_up(cmid, 8), _round_up(cout, 8)

    # 2x2 pool taps, channels-first, (batch*space) flattened onto the lane
    # axis.  Single fused XLA gather; no NHWC transpose of input or output.
    taps = [x_nchw[:, :, dy::2, dx::2] for dy in (0, 1) for dx in (0, 1)]
    x4 = jnp.transpose(jnp.stack(taps, axis=0), (0, 2, 1, 3, 4)).reshape(4, cin, m)
    x4 = jnp.pad(x4, ((0, 0), (0, cin_p - cin), (0, 0)))

    # Constant per-lane indices for the in-kernel 3x3 halo masks.
    idx = jnp.arange(m, dtype=jnp.int32)
    hw_ids = (idx % hw).reshape(1, m)
    col_ids = (idx % wp).reshape(1, m)

    # torch conv weights (O, I, 3, 3) -> zero-pad channels -> (O_p, 9*I_p)
    # im2col weights (tap-major K), pre-cast to bf16 for the MXU.
    def pack_weight(w, o_pad, i_pad):
        o, i = w.shape[0], w.shape[1]
        w = jnp.pad(w, ((0, o_pad - o), (0, i_pad - i), (0, 0), (0, 0)))
        return jnp.transpose(w, (0, 2, 3, 1)).reshape(o_pad, 9 * i_pad).astype(jnp.bfloat16)

    w1 = pack_weight(w1_t, cmid_p, cin_p)
    w2 = pack_weight(w2_t, cout_p, cmid_p)

    def pack_affine(v, pad, fill):
        return jnp.pad(v, (0, pad - v.shape[0]), constant_values=fill).reshape(-1, 1)

    g1p, bt1p = pack_affine(g1, cmid_p, 1.0), pack_affine(bt1, cmid_p, 0.0)
    g2p, bt2p = pack_affine(g2, cout_p, 1.0), pack_affine(bt2, cout_p, 0.0)

    vmem = pl.BlockSpec(memory_space=pltpu.MemorySpace.VMEM)
    out = pl.pallas_call(
        functools.partial(_down_kernel, n_batch=n, hp=hp, wp=wp),
        out_shape=jax.ShapeDtypeStruct((n, cout_p, hw), jnp.float32),
        in_specs=[vmem] * 9,
        out_specs=vmem,
        compiler_params=pltpu.CompilerParams(vmem_limit_bytes=32 * 1024 * 1024),
    )(x4, hw_ids, col_ids, w1, g1p, bt1p, w2, g2p, bt2p)

    # Drop channel padding; flattened NCHW -> NCHW is a pure reshape.
    return out[:, :cout].reshape(n, cout, hp, wp)


def ref_forward(x_nchw, params):
    """Pure-JAX f32 reference (NCHW, matches PyTorch training-mode forward)."""
    w1_t, b1, g1, bt1, w2_t, b2, g2, bt2 = params
    p = lax.reduce_window(x_nchw, -jnp.inf, lax.max,
                          (1, 1, 2, 2), (1, 1, 2, 2), 'VALID')

    def conv_bn_relu(x, w, b, g, bt):
        y = lax.conv_general_dilated(
            x, w, (1, 1), ((1, 1), (1, 1)),
            dimension_numbers=('NCHW', 'OIHW', 'NCHW'))
        y = y + b[None, :, None, None]
        mu = jnp.mean(y, axis=(0, 2, 3), keepdims=True)
        var = jnp.mean((y - mu) ** 2, axis=(0, 2, 3), keepdims=True)
        y = (y - mu) / jnp.sqrt(var + EPS)
        y = y * g[None, :, None, None] + bt[None, :, None, None]
        return jnp.maximum(y, 0.0)

    h = conv_bn_relu(p, w1_t, b1, g1, bt1)
    return conv_bn_relu(h, w2_t, b2, g2, bt2)


def init_params(key, in_channels, out_channels):
    mid_channels = out_channels
    ks = jax.random.split(key, 8)
    w1 = 0.1 * jax.random.normal(ks[0], (mid_channels, in_channels, 3, 3), jnp.float32)
    b1 = 0.1 * jax.random.normal(ks[1], (mid_channels,), jnp.float32)
    g1 = 1.0 + 0.1 * jax.random.normal(ks[2], (mid_channels,), jnp.float32)
    bt1 = 0.1 * jax.random.normal(ks[3], (mid_channels,), jnp.float32)
    w2 = 0.1 * jax.random.normal(ks[4], (out_channels, mid_channels, 3, 3), jnp.float32)
    b2 = 0.1 * jax.random.normal(ks[5], (out_channels,), jnp.float32)
    g2 = 1.0 + 0.1 * jax.random.normal(ks[6], (out_channels,), jnp.float32)
    bt2 = 0.1 * jax.random.normal(ks[7], (out_channels,), jnp.float32)
    return (w1, b1, g1, bt1, w2, b2, g2, bt2)


if __name__ == "__main__":
    key = jax.random.PRNGKey(0)
    kx, kp = jax.random.split(key)

    N, Cin, H, W = 2, 4, 16, 16
    Cout = 8
    x = jax.random.normal(kx, (N, Cin, H, W), jnp.float32)
    params = init_params(kp, Cin, Cout)

    out = jax.block_until_ready(down_forward(x, params))
    ref = jax.block_until_ready(ref_forward(x, params))

    assert out.shape == (N, Cout, H // 2, W // 2)
    # bf16 MXU operands (f32 accumulation / BN stats) vs. the f32 reference:
    # compare with a correspondingly loose tolerance.
    np.testing.assert_allclose(np.asarray(out), np.asarray(ref),
                               rtol=3e-2, atol=3e-2)
    print("KERNEL_OK")
</pallas_src>

<mosaic_0001>
module attributes {stable_mosaic.version = 11 : i64} {
  func.func @_down_kernel(%arg0: memref<4x8x128xf32, #tpu.memory_space<vmem>>, %arg1: memref<1x128xi32, #tpu.memory_space<vmem>>, %arg2: memref<1x128xi32, #tpu.memory_space<vmem>>, %arg3: memref<8x72xbf16, #tpu.memory_space<vmem>>, %arg4: memref<8x1xf32, #tpu.memory_space<vmem>>, %arg5: memref<8x1xf32, #tpu.memory_space<vmem>>, %arg6: memref<8x72xbf16, #tpu.memory_space<vmem>>, %arg7: memref<8x1xf32, #tpu.memory_space<vmem>>, %arg8: memref<8x1xf32, #tpu.memory_space<vmem>>, %arg9: memref<2x8x64xf32, #tpu.memory_space<vmem>>) attributes {dimension_semantics = [], scalar_prefetch = 0 : i64, scratch_operands = 0 : i64, tpu.core_type = #tpu.core_type<tc>} {
    %c0 = arith.constant 0 : index
    %c0_0 = arith.constant 0 : index
    %c0_1 = arith.constant 0 : index
    %0 = vector.load %arg0[%c0, %c0_0, %c0_1] : memref<4x8x128xf32, #tpu.memory_space<vmem>>, vector<1x8x128xf32>
    %1 = vector.shape_cast %0 : vector<1x8x128xf32> to vector<8x128xf32>
    %c1 = arith.constant 1 : index
    %c0_2 = arith.constant 0 : index
    %c0_3 = arith.constant 0 : index
    %2 = vector.load %arg0[%c1, %c0_2, %c0_3] : memref<4x8x128xf32, #tpu.memory_space<vmem>>, vector<1x8x128xf32>
    %3 = vector.shape_cast %2 : vector<1x8x128xf32> to vector<8x128xf32>
    %4 = arith.maximumf %1, %3 : vector<8x128xf32>
    %c2 = arith.constant 2 : index
    %c0_4 = arith.constant 0 : index
    %c0_5 = arith.constant 0 : index
    %5 = vector.load %arg0[%c2, %c0_4, %c0_5] : memref<4x8x128xf32, #tpu.memory_space<vmem>>, vector<1x8x128xf32>
    %6 = vector.shape_cast %5 : vector<1x8x128xf32> to vector<8x128xf32>
    %c3 = arith.constant 3 : index
    %c0_6 = arith.constant 0 : index
    %c0_7 = arith.constant 0 : index
    %7 = vector.load %arg0[%c3, %c0_6, %c0_7] : memref<4x8x128xf32, #tpu.memory_space<vmem>>, vector<1x8x128xf32>
    %8 = vector.shape_cast %7 : vector<1x8x128xf32> to vector<8x128xf32>
    %9 = arith.maximumf %6, %8 : vector<8x128xf32>
    %10 = arith.maximumf %4, %9 : vector<8x128xf32>
    %c0_8 = arith.constant 0 : index
    %c0_9 = arith.constant 0 : index
    %11 = vector.load %arg1[%c0_8, %c0_9] : memref<1x128xi32, #tpu.memory_space<vmem>>, vector<1x128xi32>
    %c0_10 = arith.constant 0 : index
    %c0_11 = arith.constant 0 : index
    %12 = vector.load %arg2[%c0_10, %c0_11] : memref<1x128xi32, #tpu.memory_space<vmem>>, vector<1x128xi32>
    %c-8_i32 = arith.constant -8 : i32
    %13 = vector.broadcast %c-8_i32 : i32 to vector<1x128xi32>
    %14 = arith.addi %11, %13 : vector<1x128xi32>
    %c0_i32 = arith.constant 0 : i32
    %15 = vector.broadcast %c0_i32 : i32 to vector<1x128xi32>
    %16 = arith.cmpi sge, %14, %15 : vector<1x128xi32>
    %c-8_i32_12 = arith.constant -8 : i32
    %17 = vector.broadcast %c-8_i32_12 : i32 to vector<1x128xi32>
    %18 = arith.addi %11, %17 : vector<1x128xi32>
    %c64_i32 = arith.constant 64 : i32
    %19 = vector.broadcast %c64_i32 : i32 to vector<1x128xi32>
    %20 = arith.cmpi slt, %18, %19 : vector<1x128xi32>
    %21 = arith.andi %16, %20 : vector<1x128xi1>
    %c-1_i32 = arith.constant -1 : i32
    %22 = vector.broadcast %c-1_i32 : i32 to vector<1x128xi32>
    %23 = arith.addi %12, %22 : vector<1x128xi32>
    %c0_i32_13 = arith.constant 0 : i32
    %24 = vector.broadcast %c0_i32_13 : i32 to vector<1x128xi32>
    %25 = arith.cmpi sge, %23, %24 : vector<1x128xi32>
    %26 = arith.andi %21, %25 : vector<1x128xi1>
    %c-1_i32_14 = arith.constant -1 : i32
    %27 = vector.broadcast %c-1_i32_14 : i32 to vector<1x128xi32>
    %28 = arith.addi %12, %27 : vector<1x128xi32>
    %c8_i32 = arith.constant 8 : i32
    %29 = vector.broadcast %c8_i32 : i32 to vector<1x128xi32>
    %30 = arith.cmpi slt, %28, %29 : vector<1x128xi32>
    %31 = arith.andi %26, %30 : vector<1x128xi1>
    %c-8_i32_15 = arith.constant -8 : i32
    %32 = vector.broadcast %c-8_i32_15 : i32 to vector<1x128xi32>
    %33 = arith.addi %11, %32 : vector<1x128xi32>
    %c0_i32_16 = arith.constant 0 : i32
    %34 = vector.broadcast %c0_i32_16 : i32 to vector<1x128xi32>
    %35 = arith.cmpi sge, %33, %34 : vector<1x128xi32>
    %c-8_i32_17 = arith.constant -8 : i32
    %36 = vector.broadcast %c-8_i32_17 : i32 to vector<1x128xi32>
    %37 = arith.addi %11, %36 : vector<1x128xi32>
    %c64_i32_18 = arith.constant 64 : i32
    %38 = vector.broadcast %c64_i32_18 : i32 to vector<1x128xi32>
    %39 = arith.cmpi slt, %37, %38 : vector<1x128xi32>
    %40 = arith.andi %35, %39 : vector<1x128xi1>
    %c0_i32_19 = arith.constant 0 : i32
    %41 = vector.broadcast %c0_i32_19 : i32 to vector<1x128xi32>
    %42 = arith.addi %12, %41 : vector<1x128xi32>
    %c0_i32_20 = arith.constant 0 : i32
    %43 = vector.broadcast %c0_i32_20 : i32 to vector<1x128xi32>
    %44 = arith.cmpi sge, %42, %43 : vector<1x128xi32>
    %45 = arith.andi %40, %44 : vector<1x128xi1>
    %c0_i32_21 = arith.constant 0 : i32
    %46 = vector.broadcast %c0_i32_21 : i32 to vector<1x128xi32>
    %47 = arith.addi %12, %46 : vector<1x128xi32>
    %c8_i32_22 = arith.constant 8 : i32
    %48 = vector.broadcast %c8_i32_22 : i32 to vector<1x128xi32>
    %49 = arith.cmpi slt, %47, %48 : vector<1x128xi32>
    %50 = arith.andi %45, %49 : vector<1x128xi1>
    %c-8_i32_23 = arith.constant -8 : i32
    %51 = vector.broadcast %c-8_i32_23 : i32 to vector<1x128xi32>
    %52 = arith.addi %11, %51 : vector<1x128xi32>
    %c0_i32_24 = arith.constant 0 : i32
    %53 = vector.broadcast %c0_i32_24 : i32 to vector<1x128xi32>
    %54 = arith.cmpi sge, %52, %53 : vector<1x128xi32>
    %c-8_i32_25 = arith.constant -8 : i32
    %55 = vector.broadcast %c-8_i32_25 : i32 to vector<1x128xi32>
    %56 = arith.addi %11, %55 : vector<1x128xi32>
    %c64_i32_26 = arith.constant 64 : i32
    %57 = vector.broadcast %c64_i32_26 : i32 to vector<1x128xi32>
    %58 = arith.cmpi slt, %56, %57 : vector<1x128xi32>
    %59 = arith.andi %54, %58 : vector<1x128xi1>
    %c1_i32 = arith.constant 1 : i32
    %60 = vector.broadcast %c1_i32 : i32 to vector<1x128xi32>
    %61 = arith.addi %12, %60 : vector<1x128xi32>
    %c0_i32_27 = arith.constant 0 : i32
    %62 = vector.broadcast %c0_i32_27 : i32 to vector<1x128xi32>
    %63 = arith.cmpi sge, %61, %62 : vector<1x128xi32>
    %64 = arith.andi %59, %63 : vector<1x128xi1>
    %c1_i32_28 = arith.constant 1 : i32
    %65 = vector.broadcast %c1_i32_28 : i32 to vector<1x128xi32>
    %66 = arith.addi %12, %65 : vector<1x128xi32>
    %c8_i32_29 = arith.constant 8 : i32
    %67 = vector.broadcast %c8_i32_29 : i32 to vector<1x128xi32>
    %68 = arith.cmpi slt, %66, %67 : vector<1x128xi32>
    %69 = arith.andi %64, %68 : vector<1x128xi1>
    %c0_i32_30 = arith.constant 0 : i32
    %70 = vector.broadcast %c0_i32_30 : i32 to vector<1x128xi32>
    %71 = arith.addi %11, %70 : vector<1x128xi32>
    %c0_i32_31 = arith.constant 0 : i32
    %72 = vector.broadcast %c0_i32_31 : i32 to vector<1x128xi32>
    %73 = arith.cmpi sge, %71, %72 : vector<1x128xi32>
    %c0_i32_32 = arith.constant 0 : i32
    %74 = vector.broadcast %c0_i32_32 : i32 to vector<1x128xi32>
    %75 = arith.addi %11, %74 : vector<1x128xi32>
    %c64_i32_33 = arith.constant 64 : i32
    %76 = vector.broadcast %c64_i32_33 : i32 to vector<1x128xi32>
    %77 = arith.cmpi slt, %75, %76 : vector<1x128xi32>
    %78 = arith.andi %73, %77 : vector<1x128xi1>
    %c-1_i32_34 = arith.constant -1 : i32
    %79 = vector.broadcast %c-1_i32_34 : i32 to vector<1x128xi32>
    %80 = arith.addi %12, %79 : vector<1x128xi32>
    %c0_i32_35 = arith.constant 0 : i32
    %81 = vector.broadcast %c0_i32_35 : i32 to vector<1x128xi32>
    %82 = arith.cmpi sge, %80, %81 : vector<1x128xi32>
    %83 = arith.andi %78, %82 : vector<1x128xi1>
    %c-1_i32_36 = arith.constant -1 : i32
    %84 = vector.broadcast %c-1_i32_36 : i32 to vector<1x128xi32>
    %85 = arith.addi %12, %84 : vector<1x128xi32>
    %c8_i32_37 = arith.constant 8 : i32
    %86 = vector.broadcast %c8_i32_37 : i32 to vector<1x128xi32>
    %87 = arith.cmpi slt, %85, %86 : vector<1x128xi32>
    %88 = arith.andi %83, %87 : vector<1x128xi1>
    %c0_i32_38 = arith.constant 0 : i32
    %89 = vector.broadcast %c0_i32_38 : i32 to vector<1x128xi32>
    %90 = arith.addi %11, %89 : vector<1x128xi32>
    %c0_i32_39 = arith.constant 0 : i32
    %91 = vector.broadcast %c0_i32_39 : i32 to vector<1x128xi32>
    %92 = arith.cmpi sge, %90, %91 : vector<1x128xi32>
    %c0_i32_40 = arith.constant 0 : i32
    %93 = vector.broadcast %c0_i32_40 : i32 to vector<1x128xi32>
    %94 = arith.addi %11, %93 : vector<1x128xi32>
    %c64_i32_41 = arith.constant 64 : i32
    %95 = vector.broadcast %c64_i32_41 : i32 to vector<1x128xi32>
    %96 = arith.cmpi slt, %94, %95 : vector<1x128xi32>
    %97 = arith.andi %92, %96 : vector<1x128xi1>
    %c0_i32_42 = arith.constant 0 : i32
    %98 = vector.broadcast %c0_i32_42 : i32 to vector<1x128xi32>
    %99 = arith.addi %12, %98 : vector<1x128xi32>
    %c0_i32_43 = arith.constant 0 : i32
    %100 = vector.broadcast %c0_i32_43 : i32 to vector<1x128xi32>
    %101 = arith.cmpi sge, %99, %100 : vector<1x128xi32>
    %102 = arith.andi %97, %101 : vector<1x128xi1>
    %c0_i32_44 = arith.constant 0 : i32
    %103 = vector.broadcast %c0_i32_44 : i32 to vector<1x128xi32>
    %104 = arith.addi %12, %103 : vector<1x128xi32>
    %c8_i32_45 = arith.constant 8 : i32
    %105 = vector.broadcast %c8_i32_45 : i32 to vector<1x128xi32>
    %106 = arith.cmpi slt, %104, %105 : vector<1x128xi32>
    %107 = arith.andi %102, %106 : vector<1x128xi1>
    %c0_i32_46 = arith.constant 0 : i32
    %108 = vector.broadcast %c0_i32_46 : i32 to vector<1x128xi32>
    %109 = arith.addi %11, %108 : vector<1x128xi32>
    %c0_i32_47 = arith.constant 0 : i32
    %110 = vector.broadcast %c0_i32_47 : i32 to vector<1x128xi32>
    %111 = arith.cmpi sge, %109, %110 : vector<1x128xi32>
    %c0_i32_48 = arith.constant 0 : i32
    %112 = vector.broadcast %c0_i32_48 : i32 to vector<1x128xi32>
    %113 = arith.addi %11, %112 : vector<1x128xi32>
    %c64_i32_49 = arith.constant 64 : i32
    %114 = vector.broadcast %c64_i32_49 : i32 to vector<1x128xi32>
    %115 = arith.cmpi slt, %113, %114 : vector<1x128xi32>
    %116 = arith.andi %111, %115 : vector<1x128xi1>
    %c1_i32_50 = arith.constant 1 : i32
    %117 = vector.broadcast %c1_i32_50 : i32 to vector<1x128xi32>
    %118 = arith.addi %12, %117 : vector<1x128xi32>
    %c0_i32_51 = arith.constant 0 : i32
    %119 = vector.broadcast %c0_i32_51 : i32 to vector<1x128xi32>
    %120 = arith.cmpi sge, %118, %119 : vector<1x128xi32>
    %121 = arith.andi %116, %120 : vector<1x128xi1>
    %c1_i32_52 = arith.constant 1 : i32
    %122 = vector.broadcast %c1_i32_52 : i32 to vector<1x128xi32>
    %123 = arith.addi %12, %122 : vector<1x128xi32>
    %c8_i32_53 = arith.constant 8 : i32
    %124 = vector.broadcast %c8_i32_53 : i32 to vector<1x128xi32>
    %125 = arith.cmpi slt, %123, %124 : vector<1x128xi32>
    %126 = arith.andi %121, %125 : vector<1x128xi1>
    %c8_i32_54 = arith.constant 8 : i32
    %127 = vector.broadcast %c8_i32_54 : i32 to vector<1x128xi32>
    %128 = arith.addi %11, %127 : vector<1x128xi32>
    %c0_i32_55 = arith.constant 0 : i32
    %129 = vector.broadcast %c0_i32_55 : i32 to vector<1x128xi32>
    %130 = arith.cmpi sge, %128, %129 : vector<1x128xi32>
    %c8_i32_56 = arith.constant 8 : i32
    %131 = vector.broadcast %c8_i32_56 : i32 to vector<1x128xi32>
    %132 = arith.addi %11, %131 : vector<1x128xi32>
    %c64_i32_57 = arith.constant 64 : i32
    %133 = vector.broadcast %c64_i32_57 : i32 to vector<1x128xi32>
    %134 = arith.cmpi slt, %132, %133 : vector<1x128xi32>
    %135 = arith.andi %130, %134 : vector<1x128xi1>
    %c-1_i32_58 = arith.constant -1 : i32
    %136 = vector.broadcast %c-1_i32_58 : i32 to vector<1x128xi32>
    %137 = arith.addi %12, %136 : vector<1x128xi32>
    %c0_i32_59 = arith.constant 0 : i32
    %138 = vector.broadcast %c0_i32_59 : i32 to vector<1x128xi32>
    %139 = arith.cmpi sge, %137, %138 : vector<1x128xi32>
    %140 = arith.andi %135, %139 : vector<1x128xi1>
    %c-1_i32_60 = arith.constant -1 : i32
    %141 = vector.broadcast %c-1_i32_60 : i32 to vector<1x128xi32>
    %142 = arith.addi %12, %141 : vector<1x128xi32>
    %c8_i32_61 = arith.constant 8 : i32
    %143 = vector.broadcast %c8_i32_61 : i32 to vector<1x128xi32>
    %144 = arith.cmpi slt, %142, %143 : vector<1x128xi32>
    %145 = arith.andi %140, %144 : vector<1x128xi1>
    %c8_i32_62 = arith.constant 8 : i32
    %146 = vector.broadcast %c8_i32_62 : i32 to vector<1x128xi32>
    %147 = arith.addi %11, %146 : vector<1x128xi32>
    %c0_i32_63 = arith.constant 0 : i32
    %148 = vector.broadcast %c0_i32_63 : i32 to vector<1x128xi32>
    %149 = arith.cmpi sge, %147, %148 : vector<1x128xi32>
    %c8_i32_64 = arith.constant 8 : i32
    %150 = vector.broadcast %c8_i32_64 : i32 to vector<1x128xi32>
    %151 = arith.addi %11, %150 : vector<1x128xi32>
    %c64_i32_65 = arith.constant 64 : i32
    %152 = vector.broadcast %c64_i32_65 : i32 to vector<1x128xi32>
    %153 = arith.cmpi slt, %151, %152 : vector<1x128xi32>
    %154 = arith.andi %149, %153 : vector<1x128xi1>
    %c0_i32_66 = arith.constant 0 : i32
    %155 = vector.broadcast %c0_i32_66 : i32 to vector<1x128xi32>
    %156 = arith.addi %12, %155 : vector<1x128xi32>
    %c0_i32_67 = arith.constant 0 : i32
    %157 = vector.broadcast %c0_i32_67 : i32 to vector<1x128xi32>
    %158 = arith.cmpi sge, %156, %157 : vector<1x128xi32>
    %159 = arith.andi %154, %158 : vector<1x128xi1>
    %c0_i32_68 = arith.constant 0 : i32
    %160 = vector.broadcast %c0_i32_68 : i32 to vector<1x128xi32>
    %161 = arith.addi %12, %160 : vector<1x128xi32>
    %c8_i32_69 = arith.constant 8 : i32
    %162 = vector.broadcast %c8_i32_69 : i32 to vector<1x128xi32>
    %163 = arith.cmpi slt, %161, %162 : vector<1x128xi32>
    %164 = arith.andi %159, %163 : vector<1x128xi1>
    %c8_i32_70 = arith.constant 8 : i32
    %165 = vector.broadcast %c8_i32_70 : i32 to vector<1x128xi32>
    %166 = arith.addi %11, %165 : vector<1x128xi32>
    %c0_i32_71 = arith.constant 0 : i32
    %167 = vector.broadcast %c0_i32_71 : i32 to vector<1x128xi32>
    %168 = arith.cmpi sge, %166, %167 : vector<1x128xi32>
    %c8_i32_72 = arith.constant 8 : i32
    %169 = vector.broadcast %c8_i32_72 : i32 to vector<1x128xi32>
    %170 = arith.addi %11, %169 : vector<1x128xi32>
    %c64_i32_73 = arith.constant 64 : i32
    %171 = vector.broadcast %c64_i32_73 : i32 to vector<1x128xi32>
    %172 = arith.cmpi slt, %170, %171 : vector<1x128xi32>
    %173 = arith.andi %168, %172 : vector<1x128xi1>
    %c1_i32_74 = arith.constant 1 : i32
    %174 = vector.broadcast %c1_i32_74 : i32 to vector<1x128xi32>
    %175 = arith.addi %12, %174 : vector<1x128xi32>
    %c0_i32_75 = arith.constant 0 : i32
    %176 = vector.broadcast %c0_i32_75 : i32 to vector<1x128xi32>
    %177 = arith.cmpi sge, %175, %176 : vector<1x128xi32>
    %178 = arith.andi %173, %177 : vector<1x128xi1>
    %c1_i32_76 = arith.constant 1 : i32
    %179 = vector.broadcast %c1_i32_76 : i32 to vector<1x128xi32>
    %180 = arith.addi %12, %179 : vector<1x128xi32>
    %c8_i32_77 = arith.constant 8 : i32
    %181 = vector.broadcast %c8_i32_77 : i32 to vector<1x128xi32>
    %182 = arith.cmpi slt, %180, %181 : vector<1x128xi32>
    %183 = arith.andi %178, %182 : vector<1x128xi1>
    %c0_78 = arith.constant 0 : index
    %c0_79 = arith.constant 0 : index
    %184 = vector.load %arg3[%c0_78, %c0_79] : memref<8x72xbf16, #tpu.memory_space<vmem>>, vector<8x72xbf16>
    %c9_i32 = arith.constant 9 : i32
    %185 = tpu.dynamic_rotate %10 by %c9_i32 dim 1 : vector<8x128xf32>, i32 -> vector<8x128xf32>
    %cst = arith.constant 0.000000e+00 : f32
    %186 = vector.shape_cast %31 : vector<1x128xi1> to vector<1x128xi1>
    %187 = vector.broadcast %186 : vector<1x128xi1> to vector<8x128xi1>
    %188 = vector.broadcast %cst : f32 to vector<8x128xf32>
    %189 = arith.select %187, %185, %188 : vector<8x128xi1>, vector<8x128xf32>
    %c8_i32_80 = arith.constant 8 : i32
    %190 = tpu.dynamic_rotate %10 by %c8_i32_80 dim 1 : vector<8x128xf32>, i32 -> vector<8x128xf32>
    %cst_81 = arith.constant 0.000000e+00 : f32
    %191 = vector.shape_cast %50 : vector<1x128xi1> to vector<1x128xi1>
    %192 = vector.broadcast %191 : vector<1x128xi1> to vector<8x128xi1>
    %193 = vector.broadcast %cst_81 : f32 to vector<8x128xf32>
    %194 = arith.select %192, %190, %193 : vector<8x128xi1>, vector<8x128xf32>
    %c7_i32 = arith.constant 7 : i32
    %195 = tpu.dynamic_rotate %10 by %c7_i32 dim 1 : vector<8x128xf32>, i32 -> vector<8x128xf32>
    %cst_82 = arith.constant 0.000000e+00 : f32
    %196 = vector.shape_cast %69 : vector<1x128xi1> to vector<1x128xi1>
    %197 = vector.broadcast %196 : vector<1x128xi1> to vector<8x128xi1>
    %198 = vector.broadcast %cst_82 : f32 to vector<8x128xf32>
    %199 = arith.select %197, %195, %198 : vector<8x128xi1>, vector<8x128xf32>
    %c1_i32_83 = arith.constant 1 : i32
    %200 = tpu.dynamic_rotate %10 by %c1_i32_83 dim 1 : vector<8x128xf32>, i32 -> vector<8x128xf32>
    %cst_84 = arith.constant 0.000000e+00 : f32
    %201 = vector.shape_cast %88 : vector<1x128xi1> to vector<1x128xi1>
    %202 = vector.broadcast %201 : vector<1x128xi1> to vector<8x128xi1>
    %203 = vector.broadcast %cst_84 : f32 to vector<8x128xf32>
    %204 = arith.select %202, %200, %203 : vector<8x128xi1>, vector<8x128xf32>
    %cst_85 = arith.constant 0.000000e+00 : f32
    %205 = vector.shape_cast %107 : vector<1x128xi1> to vector<1x128xi1>
    %206 = vector.broadcast %205 : vector<1x128xi1> to vector<8x128xi1>
    %207 = vector.broadcast %cst_85 : f32 to vector<8x128xf32>
    %208 = arith.select %206, %10, %207 : vector<8x128xi1>, vector<8x128xf32>
    %c127_i32 = arith.constant 127 : i32
    %209 = tpu.dynamic_rotate %10 by %c127_i32 dim 1 : vector<8x128xf32>, i32 -> vector<8x128xf32>
    %cst_86 = arith.constant 0.000000e+00 : f32
    %210 = vector.shape_cast %126 : vector<1x128xi1> to vector<1x128xi1>
    %211 = vector.broadcast %210 : vector<1x128xi1> to vector<8x128xi1>
    %212 = vector.broadcast %cst_86 : f32 to vector<8x128xf32>
    %213 = arith.select %211, %209, %212 : vector<8x128xi1>, vector<8x128xf32>
    %c121_i32 = arith.constant 121 : i32
    %214 = tpu.dynamic_rotate %10 by %c121_i32 dim 1 : vector<8x128xf32>, i32 -> vector<8x128xf32>
    %cst_87 = arith.constant 0.000000e+00 : f32
    %215 = vector.shape_cast %145 : vector<1x128xi1> to vector<1x128xi1>
    %216 = vector.broadcast %215 : vector<1x128xi1> to vector<8x128xi1>
    %217 = vector.broadcast %cst_87 : f32 to vector<8x128xf32>
    %218 = arith.select %216, %214, %217 : vector<8x128xi1>, vector<8x128xf32>
    %c120_i32 = arith.constant 120 : i32
    %219 = tpu.dynamic_rotate %10 by %c120_i32 dim 1 : vector<8x128xf32>, i32 -> vector<8x128xf32>
    %cst_88 = arith.constant 0.000000e+00 : f32
    %220 = vector.shape_cast %164 : vector<1x128xi1> to vector<1x128xi1>
    %221 = vector.broadcast %220 : vector<1x128xi1> to vector<8x128xi1>
    %222 = vector.broadcast %cst_88 : f32 to vector<8x128xf32>
    %223 = arith.select %221, %219, %222 : vector<8x128xi1>, vector<8x128xf32>
    %c119_i32 = arith.constant 119 : i32
    %224 = tpu.dynamic_rotate %10 by %c119_i32 dim 1 : vector<8x128xf32>, i32 -> vector<8x128xf32>
    %cst_89 = arith.constant 0.000000e+00 : f32
    %225 = vector.shape_cast %183 : vector<1x128xi1> to vector<1x128xi1>
    %226 = vector.broadcast %225 : vector<1x128xi1> to vector<8x128xi1>
    %227 = vector.broadcast %cst_89 : f32 to vector<8x128xf32>
    %228 = arith.select %226, %224, %227 : vector<8x128xi1>, vector<8x128xf32>
    %229 = tpu.concatenate %189, %194, %199, %204, %208, %213, %218, %223, %228 in 0 : vector<8x128xf32>, vector<8x128xf32>, vector<8x128xf32>, vector<8x128xf32>, vector<8x128xf32>, vector<8x128xf32>, vector<8x128xf32>, vector<8x128xf32>, vector<8x128xf32> -> vector<72x128xf32>
    %230 = arith.truncf %229 : vector<72x128xf32> to vector<72x128xbf16>
    %cst_90 = arith.constant dense<0.000000e+00> : vector<8x128xf32>
    %231 = tpu.matmul %184, %230, %cst_90 {dimension_numbers = #tpu.dot_dimension_numbers<[1], [0], [0], [1], [0, 0, 1, 1], [], []>} : vector<8x72xbf16>, vector<72x128xbf16>, vector<8x128xf32> -> vector<8x128xf32>
    %cst_91 = arith.constant dense<0.000000e+00> : vector<8xf32>
    %232 = vector.multi_reduction <add>, %231, %cst_91 [1] : vector<8x128xf32> to vector<8xf32>
    %233 = vector.shape_cast %232 : vector<8xf32> to vector<8x1xf32>
    %cst_92 = arith.constant 1.280000e+02 : f32
    %234 = vector.broadcast %cst_92 : f32 to vector<8x1xf32>
    %235 = arith.divf %233, %234 : vector<8x1xf32>
    %236 = vector.broadcast %235 : vector<8x1xf32> to vector<8x128xf32>
    %237 = arith.subf %231, %236 : vector<8x128xf32>
    %238 = arith.mulf %237, %237 : vector<8x128xf32>
    %cst_93 = arith.constant dense<0.000000e+00> : vector<8xf32>
    %239 = vector.multi_reduction <add>, %238, %cst_93 [1] : vector<8x128xf32> to vector<8xf32>
    %240 = vector.shape_cast %239 : vector<8xf32> to vector<8x1xf32>
    %cst_94 = arith.constant 1.280000e+02 : f32
    %241 = vector.broadcast %cst_94 : f32 to vector<8x1xf32>
    %242 = arith.divf %240, %241 : vector<8x1xf32>
    %c0_95 = arith.constant 0 : index
    %c0_96 = arith.constant 0 : index
    %243 = vector.load %arg4[%c0_95, %c0_96] : memref<8x1xf32, #tpu.memory_space<vmem>>, vector<8x1xf32>
    %cst_97 = arith.constant 9.99999974E-6 : f32
    %244 = vector.broadcast %cst_97 : f32 to vector<8x1xf32>
    %245 = arith.addf %242, %244 : vector<8x1xf32>
    %246 = math.rsqrt %245 : vector<8x1xf32>
    %247 = arith.mulf %243, %246 : vector<8x1xf32>
    %c0_98 = arith.constant 0 : index
    %c0_99 = arith.constant 0 : index
    %248 = vector.load %arg5[%c0_98, %c0_99] : memref<8x1xf32, #tpu.memory_space<vmem>>, vector<8x1xf32>
    %249 = arith.mulf %235, %247 : vector<8x1xf32>
    %250 = arith.subf %248, %249 : vector<8x1xf32>
    %251 = vector.broadcast %247 : vector<8x1xf32> to vector<8x128xf32>
    %252 = arith.mulf %231, %251 : vector<8x128xf32>
    %253 = vector.broadcast %250 : vector<8x1xf32> to vector<8x128xf32>
    %254 = arith.addf %252, %253 : vector<8x128xf32>
    %cst_100 = arith.constant 0.000000e+00 : f32
    %255 = vector.broadcast %cst_100 : f32 to vector<8x128xf32>
    %256 = arith.maximumf %254, %255 : vector<8x128xf32>
    %c0_101 = arith.constant 0 : index
    %c0_102 = arith.constant 0 : index
    %257 = vector.load %arg6[%c0_101, %c0_102] : memref<8x72xbf16, #tpu.memory_space<vmem>>, vector<8x72xbf16>
    %c9_i32_103 = arith.constant 9 : i32
    %258 = tpu.dynamic_rotate %256 by %c9_i32_103 dim 1 : vector<8x128xf32>, i32 -> vector<8x128xf32>
    %cst_104 = arith.constant 0.000000e+00 : f32
    %259 = vector.shape_cast %31 : vector<1x128xi1> to vector<1x128xi1>
    %260 = vector.broadcast %259 : vector<1x128xi1> to vector<8x128xi1>
    %261 = vector.broadcast %cst_104 : f32 to vector<8x128xf32>
    %262 = arith.select %260, %258, %261 : vector<8x128xi1>, vector<8x128xf32>
    %c8_i32_105 = arith.constant 8 : i32
    %263 = tpu.dynamic_rotate %256 by %c8_i32_105 dim 1 : vector<8x128xf32>, i32 -> vector<8x128xf32>
    %cst_106 = arith.constant 0.000000e+00 : f32
    %264 = vector.shape_cast %50 : vector<1x128xi1> to vector<1x128xi1>
    %265 = vector.broadcast %264 : vector<1x128xi1> to vector<8x128xi1>
    %266 = vector.broadcast %cst_106 : f32 to vector<8x128xf32>
    %267 = arith.select %265, %263, %266 : vector<8x128xi1>, vector<8x128xf32>
    %c7_i32_107 = arith.constant 7 : i32
    %268 = tpu.dynamic_rotate %256 by %c7_i32_107 dim 1 : vector<8x128xf32>, i32 -> vector<8x128xf32>
    %cst_108 = arith.constant 0.000000e+00 : f32
    %269 = vector.shape_cast %69 : vector<1x128xi1> to vector<1x128xi1>
    %270 = vector.broadcast %269 : vector<1x128xi1> to vector<8x128xi1>
    %271 = vector.broadcast %cst_108 : f32 to vector<8x128xf32>
    %272 = arith.select %270, %268, %271 : vector<8x128xi1>, vector<8x128xf32>
    %c1_i32_109 = arith.constant 1 : i32
    %273 = tpu.dynamic_rotate %256 by %c1_i32_109 dim 1 : vector<8x128xf32>, i32 -> vector<8x128xf32>
    %cst_110 = arith.constant 0.000000e+00 : f32
    %274 = vector.shape_cast %88 : vector<1x128xi1> to vector<1x128xi1>
    %275 = vector.broadcast %274 : vector<1x128xi1> to vector<8x128xi1>
    %276 = vector.broadcast %cst_110 : f32 to vector<8x128xf32>
    %277 = arith.select %275, %273, %276 : vector<8x128xi1>, vector<8x128xf32>
    %cst_111 = arith.constant 0.000000e+00 : f32
    %278 = vector.shape_cast %107 : vector<1x128xi1> to vector<1x128xi1>
    %279 = vector.broadcast %278 : vector<1x128xi1> to vector<8x128xi1>
    %280 = vector.broadcast %cst_111 : f32 to vector<8x128xf32>
    %281 = arith.select %279, %256, %280 : vector<8x128xi1>, vector<8x128xf32>
    %c127_i32_112 = arith.constant 127 : i32
    %282 = tpu.dynamic_rotate %256 by %c127_i32_112 dim 1 : vector<8x128xf32>, i32 -> vector<8x128xf32>
    %cst_113 = arith.constant 0.000000e+00 : f32
    %283 = vector.shape_cast %126 : vector<1x128xi1> to vector<1x128xi1>
    %284 = vector.broadcast %283 : vector<1x128xi1> to vector<8x128xi1>
    %285 = vector.broadcast %cst_113 : f32 to vector<8x128xf32>
    %286 = arith.select %284, %282, %285 : vector<8x128xi1>, vector<8x128xf32>
    %c121_i32_114 = arith.constant 121 : i32
    %287 = tpu.dynamic_rotate %256 by %c121_i32_114 dim 1 : vector<8x128xf32>, i32 -> vector<8x128xf32>
    %cst_115 = arith.constant 0.000000e+00 : f32
    %288 = vector.shape_cast %145 : vector<1x128xi1> to vector<1x128xi1>
    %289 = vector.broadcast %288 : vector<1x128xi1> to vector<8x128xi1>
    %290 = vector.broadcast %cst_115 : f32 to vector<8x128xf32>
    %291 = arith.select %289, %287, %290 : vector<8x128xi1>, vector<8x128xf32>
    %c120_i32_116 = arith.constant 120 : i32
    %292 = tpu.dynamic_rotate %256 by %c120_i32_116 dim 1 : vector<8x128xf32>, i32 -> vector<8x128xf32>
    %cst_117 = arith.constant 0.000000e+00 : f32
    %293 = vector.shape_cast %164 : vector<1x128xi1> to vector<1x128xi1>
    %294 = vector.broadcast %293 : vector<1x128xi1> to vector<8x128xi1>
    %295 = vector.broadcast %cst_117 : f32 to vector<8x128xf32>
    %296 = arith.select %294, %292, %295 : vector<8x128xi1>, vector<8x128xf32>
    %c119_i32_118 = arith.constant 119 : i32
    %297 = tpu.dynamic_rotate %256 by %c119_i32_118 dim 1 : vector<8x128xf32>, i32 -> vector<8x128xf32>
    %cst_119 = arith.constant 0.000000e+00 : f32
    %298 = vector.shape_cast %183 : vector<1x128xi1> to vector<1x128xi1>
    %299 = vector.broadcast %298 : vector<1x128xi1> to vector<8x128xi1>
    %300 = vector.broadcast %cst_119 : f32 to vector<8x128xf32>
    %301 = arith.select %299, %297, %300 : vector<8x128xi1>, vector<8x128xf32>
    %302 = tpu.concatenate %262, %267, %272, %277, %281, %286, %291, %296, %301 in 0 : vector<8x128xf32>, vector<8x128xf32>, vector<8x128xf32>, vector<8x128xf32>, vector<8x128xf32>, vector<8x128xf32>, vector<8x128xf32>, vector<8x128xf32>, vector<8x128xf32> -> vector<72x128xf32>
    %303 = arith.truncf %302 : vector<72x128xf32> to vector<72x128xbf16>
    %cst_120 = arith.constant dense<0.000000e+00> : vector<8x128xf32>
    %304 = tpu.matmul %257, %303, %cst_120 {dimension_numbers = #tpu.dot_dimension_numbers<[1], [0], [0], [1], [0, 0, 1, 1], [], []>} : vector<8x72xbf16>, vector<72x128xbf16>, vector<8x128xf32> -> vector<8x128xf32>
    %cst_121 = arith.constant dense<0.000000e+00> : vector<8xf32>
    %305 = vector.multi_reduction <add>, %304, %cst_121 [1] : vector<8x128xf32> to vector<8xf32>
    %306 = vector.shape_cast %305 : vector<8xf32> to vector<8x1xf32>
    %cst_122 = arith.constant 1.280000e+02 : f32
    %307 = vector.broadcast %cst_122 : f32 to vector<8x1xf32>
    %308 = arith.divf %306, %307 : vector<8x1xf32>
    %309 = vector.broadcast %308 : vector<8x1xf32> to vector<8x128xf32>
    %310 = arith.subf %304, %309 : vector<8x128xf32>
    %311 = arith.mulf %310, %310 : vector<8x128xf32>
    %cst_123 = arith.constant dense<0.000000e+00> : vector<8xf32>
    %312 = vector.multi_reduction <add>, %311, %cst_123 [1] : vector<8x128xf32> to vector<8xf32>
    %313 = vector.shape_cast %312 : vector<8xf32> to vector<8x1xf32>
    %cst_124 = arith.constant 1.280000e+02 : f32
    %314 = vector.broadcast %cst_124 : f32 to vector<8x1xf32>
    %315 = arith.divf %313, %314 : vector<8x1xf32>
    %c0_125 = arith.constant 0 : index
    %c0_126 = arith.constant 0 : index
    %316 = vector.load %arg7[%c0_125, %c0_126] : memref<8x1xf32, #tpu.memory_space<vmem>>, vector<8x1xf32>
    %cst_127 = arith.constant 9.99999974E-6 : f32
    %317 = vector.broadcast %cst_127 : f32 to vector<8x1xf32>
    %318 = arith.addf %315, %317 : vector<8x1xf32>
    %319 = math.rsqrt %318 : vector<8x1xf32>
    %320 = arith.mulf %316, %319 : vector<8x1xf32>
    %c0_128 = arith.constant 0 : index
    %c0_129 = arith.constant 0 : index
    %321 = vector.load %arg8[%c0_128, %c0_129] : memref<8x1xf32, #tpu.memory_space<vmem>>, vector<8x1xf32>
    %322 = arith.mulf %308, %320 : vector<8x1xf32>
    %323 = arith.subf %321, %322 : vector<8x1xf32>
    %324 = vector.broadcast %320 : vector<8x1xf32> to vector<8x128xf32>
    %325 = arith.mulf %304, %324 : vector<8x128xf32>
    %326 = vector.broadcast %323 : vector<8x1xf32> to vector<8x128xf32>
    %327 = arith.addf %325, %326 : vector<8x128xf32>
    %cst_130 = arith.constant 0.000000e+00 : f32
    %328 = vector.broadcast %cst_130 : f32 to vector<8x128xf32>
    %329 = arith.maximumf %327, %328 : vector<8x128xf32>
    %330 = vector.extract_strided_slice %329 {offsets = [0, 0], sizes = [8, 64], strides = [1, 1]} : vector<8x128xf32> to vector<8x64xf32>
    %c0_131 = arith.constant 0 : index
    %c0_132 = arith.constant 0 : index
    %c0_133 = arith.constant 0 : index
    %331 = vector.load %arg9[%c0_131, %c0_132, %c0_133] : memref<2x8x64xf32, #tpu.memory_space<vmem>>, vector<1x8x64xf32>
    %332 = vector.shape_cast %331 : vector<1x8x64xf32> to vector<8x64xf32>
    %333 = vector.shape_cast %330 : vector<8x64xf32> to vector<1x8x64xf32>
    tpu.vector_store %arg9[%c0_131, %c0_132, %c0_133], %333 {strides = array<i32>} : memref<2x8x64xf32, #tpu.memory_space<vmem>>, vector<1x8x64xf32>,
    %334 = vector.extract_strided_slice %329 {offsets = [0, 64], sizes = [8, 64], strides = [1, 1]} : vector<8x128xf32> to vector<8x64xf32>
    %c1_134 = arith.constant 1 : index
    %c0_135 = arith.constant 0 : index
    %c0_136 = arith.constant 0 : index
    %335 = vector.load %arg9[%c1_134, %c0_135, %c0_136] : memref<2x8x64xf32, #tpu.memory_space<vmem>>, vector<1x8x64xf32>
    %336 = vector.shape_cast %335 : vector<1x8x64xf32> to vector<8x64xf32>
    %337 = vector.shape_cast %334 : vector<8x64xf32> to vector<1x8x64xf32>
    tpu.vector_store %arg9[%c1_134, %c0_135, %c0_136], %337 {strides = array<i32>} : memref<2x8x64xf32, #tpu.memory_space<vmem>>, vector<1x8x64xf32>,
    return
  }
}

</mosaic_0001>

<llo_original>
// kernel: tpu_custom_call.1
$region0: #{tpu_custom_call.1}
  #allocation0 [shape = 'u32[]', space=smem, size = 0x4, offset = 0x4, fixed_abs, tag = 'smem constant byte address 0x4 - core index']
  #allocation1 [shape = 'u32[144,128]{1,0:T(1,128)}', space=vmem, size = 0x12000, scoped, tag = 'internal scratch']
  %s0 = inlined_call_operand.vmem [shape: f32[4,8,128], index: 0, kind: input, shape index: {}]
  %s1 = inlined_call_operand.vmem [shape: s32[1,128], index: 1, kind: input, shape index: {}]
  %s2 = inlined_call_operand.vmem [shape: s32[1,128], index: 2, kind: input, shape index: {}]
  %s3 = inlined_call_operand.vmem [shape: bf16[8,72], index: 3, kind: input, shape index: {}]
  %s4 = inlined_call_operand.vmem [shape: f32[8,1], index: 4, kind: input, shape index: {}]
  %s5 = inlined_call_operand.vmem [shape: f32[8,1], index: 5, kind: input, shape index: {}]
  %s6 = inlined_call_operand.vmem [shape: bf16[8,72], index: 6, kind: input, shape index: {}]
  %s7 = inlined_call_operand.vmem [shape: f32[8,1], index: 7, kind: input, shape index: {}]
  %s8 = inlined_call_operand.vmem [shape: f32[8,1], index: 8, kind: input, shape index: {}]
  %s9 = inlined_call_operand.hbm [shape: f32[2,8,64], index: 9, kind: output, shape index: {}]
  %s10 = sld [smem:[#allocation0]]
  $region46: #{tpu_custom_call.1} parent=0
    _
  %s12 = ssub.s32 1, %s10
  %s13 = scalar_select 0, %s12, %s10
  $region1: #{tpu_custom_call.1} parent=0
    #allocation2 [shape = 'u8[8192]{0}', space=vmem, size = 0x2000, scoped, tag = 'output window, operand 0, single buffered']
    #allocation3 [shape = 's32[1]{0}', space=sflag, size = 0x4, scoped, tag = 'scoped memory for tpu_custom_call.1']
    %14 = vsyncpa [#allocation3], 0
    // Predicated region
    $region2: #{tpu_custom_call.1} parent=1 // pred_check
      _
    $region3: #{tpu_custom_call.1} parent=1 // pred_check_branch
      %16 = sbr.rel (0) target = $region5
    $region4: #{tpu_custom_call.1} parent=1 // pred_region
      _
    $region5: #{tpu_custom_call.1} parent=1 // pred_fallthru
      _
    // Predicated region
    $region6: #{tpu_custom_call.1} parent=1 // pred_check
      _
    $region7: #{tpu_custom_call.1} parent=1 // pred_check_branch
      %18 = sbr.rel (0) target = $region9
    $region8: #{tpu_custom_call.1} parent=1 // pred_region
      _
    $region9: #{tpu_custom_call.1} parent=1 // pred_fallthru
      _
    // Predicated region
    $region10: #{tpu_custom_call.1} parent=1 // pred_check
      _
    $region11: #{tpu_custom_call.1} parent=1 // pred_check_branch
      %20 = sbr.rel (0) target = $region13
    $region12: #{tpu_custom_call.1} parent=1 // pred_region
      _
    $region13: #{tpu_custom_call.1} parent=1 // pred_fallthru
      _
    // Predicated region
    $region14: #{tpu_custom_call.1} parent=1 // pred_check
      _
    $region15: #{tpu_custom_call.1} parent=1 // pred_check_branch
      %22 = sbr.rel (0) target = $region17
    $region16: #{tpu_custom_call.1} parent=1 // pred_region
      _
    $region17: #{tpu_custom_call.1} parent=1 // pred_fallthru
      _
    // Predicated region
    $region18: #{tpu_custom_call.1} parent=1 // pred_check
      _
    $region19: #{tpu_custom_call.1} parent=1 // pred_check_branch
      %24 = sbr.rel (0) target = $region21
    $region20: #{tpu_custom_call.1} parent=1 // pred_region
      _
    $region21: #{tpu_custom_call.1} parent=1 // pred_fallthru
      _
    // Predicated region
    $region22: #{tpu_custom_call.1} parent=1 // pred_check
      _
    $region23: #{tpu_custom_call.1} parent=1 // pred_check_branch
      %26 = sbr.rel (0) target = $region25
    $region24: #{tpu_custom_call.1} parent=1 // pred_region
      _
    $region25: #{tpu_custom_call.1} parent=1 // pred_fallthru
      _
    // Predicated region
    $region26: #{tpu_custom_call.1} parent=1 // pred_check
      _
    $region27: #{tpu_custom_call.1} parent=1 // pred_check_branch
      %28 = sbr.rel (0) target = $region29
    $region28: #{tpu_custom_call.1} parent=1 // pred_region
      _
    $region29: #{tpu_custom_call.1} parent=1 // pred_fallthru
      _
    // Predicated region
    $region30: #{tpu_custom_call.1} parent=1 // pred_check
      _
    $region31: #{tpu_custom_call.1} parent=1 // pred_check_branch
      %30 = sbr.rel (0) target = $region33
    $region32: #{tpu_custom_call.1} parent=1 // pred_region
      _
    $region33: #{tpu_custom_call.1} parent=1 // pred_fallthru
      _
    // Predicated region
    $region34: #{tpu_custom_call.1} parent=1 // pred_check
      _
    $region35: #{tpu_custom_call.1} parent=1 // pred_check_branch
      %32 = sbr.rel (0) target = $region37
    $region36: #{tpu_custom_call.1} parent=1 // pred_region
      _
    $region37: #{tpu_custom_call.1} parent=1 // pred_fallthru
      _
    %v34 = vld [vmem:[%s0] sm:$0xff]
    %s35 = scalar_lea.vmem %s0, 8
    %v36 = vld [vmem:[%s35] sm:$0xff]
    %v37 = vmax.f32 %v34, %v36
    %s38 = scalar_lea.vmem %s0, 16
    %v39 = vld [vmem:[%s38] sm:$0xff]
    %s40 = scalar_lea.vmem %s0, 24
    %v41 = vld [vmem:[%s40] sm:$0xff]
    %v42 = vmax.f32 %v39, %v41
    %v43 = vmax.f32 %v37, %v42
    %v44 = vld [vmem:[%s1] sm:$0x1]
    %v45 = vld [vmem:[%s2] sm:$0x1]
    %v46 = vadd.s32 %v44, 4294967288
    %vm47 = vcmp.ge.s32.totalorder %v46, 0
    %vm48 = vcmp.lt.s32.totalorder %v46, 64
    %vm49 = vmand %vm47, %vm48
    %v50 = vadd.s32 %v45, 4294967295
    %vm51 = vcmp.ge.s32.totalorder %v50, 0
    %vm52 = vmand %vm49, %vm51
    %vm53 = vcmp.lt.s32.totalorder %v50, 8
    %vm54 = vmand %vm52, %vm53
    %vm55 = vcmp.ge.s32.totalorder %v45, 0
    %vm56 = vmand %vm49, %vm55
    %vm57 = vcmp.lt.s32.totalorder %v45, 8
    %vm58 = vmand %vm56, %vm57
    %v59 = vadd.s32 %v45, 1
    %vm60 = vcmp.ge.s32.totalorder %v59, 0
    %vm61 = vmand %vm49, %vm60
    %vm62 = vcmp.lt.s32.totalorder %v59, 8
    %vm63 = vmand %vm61, %vm62
    %vm64 = vcmp.ge.s32.totalorder %v44, 0
    %vm65 = vcmp.lt.s32.totalorder %v44, 64
    %vm66 = vmand %vm64, %vm65
    %vm67 = vmand %vm66, %vm51
    %vm68 = vmand %vm67, %vm53
    %vm69 = vmand %vm66, %vm55
    %vm70 = vmand %vm69, %vm57
    %vm71 = vmand %vm66, %vm60
    %vm72 = vmand %vm71, %vm62
    %v73 = vadd.s32 %v44, 8
    %vm74 = vcmp.ge.s32.totalorder %v73, 0
    %vm75 = vcmp.lt.s32.totalorder %v73, 64
    %vm76 = vmand %vm74, %vm75
    %vm77 = vmand %vm76, %vm51
    %vm78 = vmand %vm77, %vm53
    %vm79 = vmand %vm76, %vm55
    %vm80 = vmand %vm79, %vm57
    %vm81 = vmand %vm76, %vm60
    %vm82 = vmand %vm81, %vm62
    %v83 = vld [vmem:[%s3] sm:$0xf]
    %84 = vrot.lane.b32.xlu0 %v43, 9
    %v85 = vpop.permute.xlu0 %84
    %v86 = vsel %vm54, 1, 0
    %v87 = vlaneseq
    %v88 = vshrl.u32 %v87, 7
    %v89 = vsub.s32 0, %v88
    %v90 = vrot.slane %v86, %v89
    %vm91 = vcmp.eq.s32.totalorder %v90, 1
    %v92 = vsel %vm91, %v85, 0.0
    %93 = vrot.lane.b32.xlu0 %v43, 8
    %v94 = vpop.permute.xlu0 %93
    %v95 = vsel %vm58, 1, 0
    %v96 = vlaneseq
    %v97 = vshrl.u32 %v96, 7
    %v98 = vsub.s32 0, %v97
    %v99 = vrot.slane %v95, %v98
    %vm100 = vcmp.eq.s32.totalorder %v99, 1
    %v101 = vsel %vm100, %v94, 0.0
    %102 = vrot.lane.b32.xlu0 %v43, 7
    %v103 = vpop.permute.xlu0 %102
    %v104 = vsel %vm63, 1, 0
    %v105 = vlaneseq
    %v106 = vshrl.u32 %v105, 7
    %v107 = vsub.s32 0, %v106
    %v108 = vrot.slane %v104, %v107
    %vm109 = vcmp.eq.s32.totalorder %v108, 1
    %v110 = vsel %vm109, %v103, 0.0
    %111 = vrot.lane.b32.xlu0 %v43, 1
    %v112 = vpop.permute.xlu0 %111
    %v113 = vsel %vm68, 1, 0
    %v114 = vlaneseq
    %v115 = vshrl.u32 %v114, 7
    %v116 = vsub.s32 0, %v115
    %v117 = vrot.slane %v113, %v116
    %vm118 = vcmp.eq.s32.totalorder %v117, 1
    %v119 = vsel %vm118, %v112, 0.0
    %v120 = vsel %vm70, 1, 0
    %v121 = vlaneseq
    %v122 = vshrl.u32 %v121, 7
    %v123 = vsub.s32 0, %v122
    %v124 = vrot.slane %v120, %v123
    %vm125 = vcmp.eq.s32.totalorder %v124, 1
    %v126 = vsel %vm125, %v43, 0.0
    %127 = vrot.lane.b32.xlu0 %v43, 127
    %v128 = vpop.permute.xlu0 %127
    %v129 = vsel %vm72, 1, 0
    %v130 = vlaneseq
    %v131 = vshrl.u32 %v130, 7
    %v132 = vsub.s32 0, %v131
    %v133 = vrot.slane %v129, %v132
    %vm134 = vcmp.eq.s32.totalorder %v133, 1
    %v135 = vsel %vm134, %v128, 0.0
    %136 = vrot.lane.b32.xlu0 %v43, 121
    %v137 = vpop.permute.xlu0 %136
    %v138 = vsel %vm78, 1, 0
    %v139 = vlaneseq
    %v140 = vshrl.u32 %v139, 7
    %v141 = vsub.s32 0, %v140
    %v142 = vrot.slane %v138, %v141
    %vm143 = vcmp.eq.s32.totalorder %v142, 1
    %v144 = vsel %vm143, %v137, 0.0
    %145 = vrot.lane.b32.xlu0 %v43, 120
    %v146 = vpop.permute.xlu0 %145
    %v147 = vsel %vm80, 1, 0
    %v148 = vlaneseq
    %v149 = vshrl.u32 %v148, 7
    %v150 = vsub.s32 0, %v149
    %v151 = vrot.slane %v147, %v150
    %vm152 = vcmp.eq.s32.totalorder %v151, 1
    %v153 = vsel %vm152, %v146, 0.0
    %154 = vrot.lane.b32.xlu0 %v43, 119
    %v155 = vpop.permute.xlu0 %154
    %v156 = vsel %vm82, 1, 0
    %v157 = vlaneseq
    %v158 = vshrl.u32 %v157, 7
    %v159 = vsub.s32 0, %v158
    %v160 = vrot.slane %v156, %v159
    %vm161 = vcmp.eq.s32.totalorder %v160, 1
    %v162 = vsel %vm161, %v155, 0.0
    %v163 = vpack.c.bf16 %v101, %v92
    %v164 = vpack.c.bf16 %v119, %v110
    %v165 = vpack.c.bf16 %v135, %v126
    %v166 = vpack.c.bf16 %v153, %v144
    %v167 = vpack.c.bf16 %v162, %v162
    %vm168 = vcmask 588800
    %v170 = vsel %vm168, %v83, 0
    %vm172 = vcmask 1043456
    %v174 = vsel %vm172, %v167, 0
    %176 = vmatprep.subr.bf16.mxu0 0
    %177 = vmatpush1.bf16.msra.mxu0 %v163
    %178 = vmatprep.subr.bf16.mxu0 0
    %179 = vmatpush1.bf16.msra.mxu0 %v164
    %180 = vmatprep.subr.bf16.mxu0 0
    %181 = vmatpush1.bf16.msra.mxu0 %v165
    %182 = vmatprep.subr.bf16.mxu0 0
    %183 = vmatpush1.bf16.msra.mxu0 %v166
    %184 = vmatprep.subr.bf16.mxu0 0
    %185 = vmatpush1.bf16.msra.mxu0 %v174
    %186 = vmatprep.subr.bf16.mxu0 0
    %187 = vmatpush1.bf16.msra.mxu0 0
    %188 = vmatprep.subr.bf16.mxu0 0
    %189 = vmatpush1.bf16.msra.mxu0 0
    %190 = vmatprep.subr.bf16.mxu0 0
    %191 = vmatpush1.bf16.msra.mxu0 0
    %192 = vmatprep.subr.bf16.mxu0 0
    %193 = vmatpush1.bf16.msra.mxu0 0
    %194 = vmatprep.subr.bf16.mxu0 0
    %195 = vmatpush1.bf16.msra.mxu0 0
    %196 = vmatprep.subr.bf16.mxu0 0
    %197 = vmatpush1.bf16.msra.mxu0 0
    %198 = vmatprep.subr.bf16.mxu0 0
    %199 = vmatpush1.bf16.msra.mxu0 0
    %200 = vmatprep.subr.bf16.mxu0 0
    %201 = vmatpush1.bf16.msra.mxu0 0
    %202 = vmatprep.subr.bf16.mxu0 0
    %203 = vmatpush1.bf16.msra.mxu0 0
    %204 = vmatprep.subr.bf16.mxu0 0
    %205 = vmatpush1.bf16.msra.mxu0 0
    %206 = vmatprep.subr.bf16.mxu0 0
    %207 = vmatpush1.bf16.msra.mxu0 0
    %208 = vmatprep.mubr.bf16.mxu0 0
    %209 = vmatmul.mubr.bf16.gmra.mrb[0].mxu0 %v170
    %v210 = vpop.f32.mrb[0].mxu0
    %v211 = vadd.f32 0.0, %v210
    %v212 = vpop.f32.mrb[0].mxu0
    %v213 = vpop.f32.mrb[0].mxu0
    %v214 = vpop.f32.mrb[0].mxu0
    %215 = vdwg.mxu0
    %216 = vadd.xlane.f32.xlu0 %v211
    %v217 = vpop.xlane.xlu0 %216
    %v218 = vrcp.pop 128.0
    %v219 = vmul.f32 %v217, %v218
    %v220 = vsub.f32 %v211, %v219
    %v221 = vmul.f32 %v220, %v220
    %222 = vadd.xlane.f32.xlu0 %v221
    %v223 = vpop.xlane.xlu0 %222
    %v224 = vmul.f32 %v223, %v218
    %v225 = vld [vmem:[%s4] sm:$0xff]
    %v226 = vadd.f32 %v224, 1e-05
    %v227 = vrsqrt.pop %v226
    %v228 = vmul.f32 %v225, %v227
    %v229 = vld [vmem:[%s5] sm:$0xff]
    %v230 = vmul.f32 %v219, %v228
    %v231 = vsub.f32 %v229, %v230
    %233 = vset.pattern.permute.xlu0 0
    %234 = vperm.xlu0 %233, %v228
    %v235 = vpop.permute.xlu0 %234
    %v237 = vmul.f32 %v211, %v235
    %239 = vset.pattern.permute.xlu0 0
    %240 = vperm.xlu0 %239, %v231
    %v241 = vpop.permute.xlu0 %240
    %v243 = vadd.f32 %v237, %v241
    %v244 = vmax.f32 %v243, 0.0
    %v245 = vld [vmem:[%s6] sm:$0xf]
    %246 = vrot.lane.b32.xlu0 %v244, 9
    %v247 = vpop.permute.xlu0 %246
    %v248 = vsel %vm91, %v247, 0.0
    %249 = vrot.lane.b32.xlu0 %v244, 8
    %v250 = vpop.permute.xlu0 %249
    %v251 = vsel %vm100, %v250, 0.0
    %252 = vrot.lane.b32.xlu0 %v244, 7
    %v253 = vpop.permute.xlu0 %252
    %v254 = vsel %vm109, %v253, 0.0
    %255 = vrot.lane.b32.xlu0 %v244, 1
    %v256 = vpop.permute.xlu0 %255
    %v257 = vsel %vm118, %v256, 0.0
    %v258 = vsel %vm125, %v244, 0.0
    %259 = vrot.lane.b32.xlu0 %v244, 127
    %v260 = vpop.permute.xlu0 %259
    %v261 = vsel %vm134, %v260, 0.0
    %262 = vrot.lane.b32.xlu0 %v244, 121
    %v263 = vpop.permute.xlu0 %262
    %v264 = vsel %vm143, %v263, 0.0
    %265 = vrot.lane.b32.xlu0 %v244, 120
    %v266 = vpop.permute.xlu0 %265
    %v267 = vsel %vm152, %v266, 0.0
    %268 = vrot.lane.b32.xlu0 %v244, 119
    %v269 = vpop.permute.xlu0 %268
    %v270 = vsel %vm161, %v269, 0.0
    %v271 = vpack.c.bf16 %v251, %v248
    %v272 = vpack.c.bf16 %v257, %v254
    %v273 = vpack.c.bf16 %v261, %v258
    %v274 = vpack.c.bf16 %v267, %v264
    %v275 = vpack.c.bf16 %v270, %v270
    %v277 = vsel %vm168, %v245, 0
    %v280 = vsel %vm172, %v275, 0
    %282 = vmatprep.subr.bf16.mxu0 0
    %283 = vmatpush1.bf16.msra.mxu0 %v271
    %284 = vmatprep.subr.bf16.mxu0 0
    %285 = vmatpush1.bf16.msra.mxu0 %v272
    %286 = vmatprep.subr.bf16.mxu0 0
    %287 = vmatpush1.bf16.msra.mxu0 %v273
    %288 = vmatprep.subr.bf16.mxu0 0
    %289 = vmatpush1.bf16.msra.mxu0 %v274
    %290 = vmatprep.subr.bf16.mxu0 0
    %291 = vmatpush1.bf16.msra.mxu0 %v280
    %292 = vmatprep.subr.bf16.mxu0 0
    %293 = vmatpush1.bf16.msra.mxu0 0
    %294 = vmatprep.subr.bf16.mxu0 0
    %295 = vmatpush1.bf16.msra.mxu0 0
    %296 = vmatprep.subr.bf16.mxu0 0
    %297 = vmatpush1.bf16.msra.mxu0 0
    %298 = vmatprep.subr.bf16.mxu0 0
    %299 = vmatpush1.bf16.msra.mxu0 0
    %300 = vmatprep.subr.bf16.mxu0 0
    %301 = vmatpush1.bf16.msra.mxu0 0
    %302 = vmatprep.subr.bf16.mxu0 0
    %303 = vmatpush1.bf16.msra.mxu0 0
    %304 = vmatprep.subr.bf16.mxu0 0
    %305 = vmatpush1.bf16.msra.mxu0 0
    %306 = vmatprep.subr.bf16.mxu0 0
    %307 = vmatpush1.bf16.msra.mxu0 0
    %308 = vmatprep.subr.bf16.mxu0 0
    %309 = vmatpush1.bf16.msra.mxu0 0
    %310 = vmatprep.subr.bf16.mxu0 0
    %311 = vmatpush1.bf16.msra.mxu0 0
    %312 = vmatprep.subr.bf16.mxu0 0
    %313 = vmatpush1.bf16.msra.mxu0 0
    %314 = vmatprep.mubr.bf16.mxu0 0
    %315 = vmatmul.mubr.bf16.gmra.mrb[0].mxu0 %v277
    %v316 = vpop.f32.mrb[0].mxu0
    %v317 = vadd.f32 0.0, %v316
    %v318 = vpop.f32.mrb[0].mxu0
    %v319 = vpop.f32.mrb[0].mxu0
    %v320 = vpop.f32.mrb[0].mxu0
    %321 = vdwg.mxu0
    %322 = vadd.xlane.f32.xlu0 %v317
    %v323 = vpop.xlane.xlu0 %322
    %v324 = vmul.f32 %v323, %v218
    %v325 = vsub.f32 %v317, %v324
    %v326 = vmul.f32 %v325, %v325
    %327 = vadd.xlane.f32.xlu0 %v326
    %v328 = vpop.xlane.xlu0 %327
    %v329 = vmul.f32 %v328, %v218
    %v330 = vld [vmem:[%s7] sm:$0xff]
    %v331 = vadd.f32 %v329, 1e-05
    %v332 = vrsqrt.pop %v331
    %v333 = vmul.f32 %v330, %v332
    %v334 = vld [vmem:[%s8] sm:$0xff]
    %v335 = vmul.f32 %v324, %v333
    %v336 = vsub.f32 %v334, %v335
    %338 = vset.pattern.permute.xlu0 0
    %339 = vperm.xlu0 %338, %v333
    %v340 = vpop.permute.xlu0 %339
    %v342 = vmul.f32 %v317, %v340
    %344 = vset.pattern.permute.xlu0 0
    %345 = vperm.xlu0 %344, %v336
    %v346 = vpop.permute.xlu0 %345
    %v348 = vadd.f32 %v342, %v346
    %v349 = vmax.f32 %v348, 0.0
    %vm350 = vcmask 523264
    %351 = vst.msk [vmem:[#allocation2] sm:$0xff] %vm350, %v349
    %353 = vrot.lane.b32.xlu0 %v349, 64
    %v354 = vpop.permute.xlu0 %353
    %s356 = scalar_lea.vmem [#allocation2], 8
    %357 = vst.msk [vmem:[%s356] sm:$0xff] %vm350, %v354
    // Predicated region
    $region38: #{tpu_custom_call.1} parent=1 // pred_check
      _
    $region39: #{tpu_custom_call.1} parent=1 // pred_check_branch
      %359 = sbr.rel (0) target = $region41
    $region40: #{tpu_custom_call.1} parent=1 // pred_region
      %s361 = ssub.s32 256, 256
      %362 = vsyncadd [#allocation3], %s361
      %s363 = sshll.u32 [#allocation2], 4
      %s364 = int_to_ptr.vmem [resolvable:$true] %s363
      %369 = dma.vmem_to_hbm [thread:$0]  %s364, 256, %s9, [#allocation3], 128, 128, 8
    $region41: #{tpu_custom_call.1} parent=1 // pred_fallthru
      _
    // Predicated region
    $region42: #{tpu_custom_call.1} parent=1 // pred_check
      _
    $region43: #{tpu_custom_call.1} parent=1 // pred_check_branch
      %371 = sbr.rel (0) target = $region45
    $region44: #{tpu_custom_call.1} parent=1 // pred_region
      %372 = dma.done [#allocation3], 256
    $region45: #{tpu_custom_call.1} parent=1 // pred_fallthru
      _
    %373 = vsyncpa [#allocation3], 1

</llo_original>
